<compile_context>
chip_gen: v7x
topology: tpu7x:2x2x1
jax: 0.10.0
libtpu: 0.0.40
codegen_flags: <defaults>
</compile_context>

<pallas_src>
import math
import functools

import jax
import jax.numpy as jnp
from jax.experimental import pallas as pl
from jax.experimental.pallas import tpu as pltpu


def _pick_tile(dim, preferred, align):
    """Largest divisor of `dim` <= `preferred` that is a multiple of `align`;
    falls back to the full dim (always legal for a BlockSpec)."""
    best = None
    t = align
    while t <= min(preferred, dim):
        if dim % t == 0:
            best = t
        t += align
    return best if best is not None else dim


# ----------------------------------------------------------------------------
# Fused linear: y = x @ W + b   (bf16 MXU inputs, fp32 accumulation)
# ----------------------------------------------------------------------------
def _linear_kernel(x_ref, w_ref, b_ref, o_ref):
    x = x_ref[...].astype(jnp.bfloat16)
    w = w_ref[...].astype(jnp.bfloat16)
    acc = jnp.dot(x, w, preferred_element_type=jnp.float32)
    o_ref[...] = (acc + b_ref[...]).astype(o_ref.dtype)


def _linear(x2d, w, b, *, tm_pref=256, tn_pref=512):
    M, K = x2d.shape
    Kw, N = w.shape
    assert K == Kw
    tm = _pick_tile(M, tm_pref, 8)      # sublane-aligned row tile
    tn = _pick_tile(N, tn_pref, 128)    # lane-aligned output-column tile
    b2 = b.reshape(1, N).astype(jnp.float32)
    return pl.pallas_call(
        _linear_kernel,
        out_shape=jax.ShapeDtypeStruct((M, N), jnp.float32),
        grid_spec=pltpu.PrefetchScalarGridSpec(
            num_scalar_prefetch=0,
            grid=(M // tm, N // tn),
            in_specs=[
                pl.BlockSpec((tm, K), lambda i, j: (i, 0)),   # x rows
                pl.BlockSpec((K, tn), lambda i, j: (0, j)),   # weight columns
                pl.BlockSpec((1, tn), lambda i, j: (0, j)),   # bias columns
            ],
            out_specs=pl.BlockSpec((tm, tn), lambda i, j: (i, j)),
        ),
        compiler_params=pltpu.CompilerParams(
            dimension_semantics=("parallel", "parallel")),
    )(x2d.astype(jnp.float32), w.astype(jnp.float32), b2)


# ----------------------------------------------------------------------------
# Flash-style causal attention over (B*n_head, T, hd)
# ----------------------------------------------------------------------------
def _flash_kernel(q_ref, k_ref, v_ref, o_ref, m_scr, l_scr, acc_scr, *,
                  scale, tq, tkv):
    qi = pl.program_id(1)
    ki = pl.program_id(2)

    @pl.when(ki == 0)
    def _init():
        m_scr[...] = jnp.full(m_scr.shape, -jnp.inf, dtype=jnp.float32)
        l_scr[...] = jnp.zeros(l_scr.shape, jnp.float32)
        acc_scr[...] = jnp.zeros(acc_scr.shape, jnp.float32)

    q_start = qi * tq
    k_start = ki * tkv

    # Causal block skipping: kv blocks strictly above the diagonal are all-masked.
    @pl.when(k_start <= q_start + (tq - 1))
    def _compute():
        # Scale Q once (O(tq*hd)) rather than scaling the (tq,tkv) score matrix.
        q = (q_ref[...].astype(jnp.float32) * scale).astype(jnp.bfloat16)
        k = k_ref[...].astype(jnp.bfloat16)
        # QK^T without an explicit transpose: contract the shared minor dim.
        s = jax.lax.dot_general(
            q, k, (((1,), (1,)), ((), ())),
            preferred_element_type=jnp.float32)                 # (tq, tkv) fp32

        row = q_start + jax.lax.broadcasted_iota(jnp.int32, (tq, tkv), 0)
        col = k_start + jax.lax.broadcasted_iota(jnp.int32, (tq, tkv), 1)
        s = jnp.where(col <= row, s, -1e30)   # finite bias: no -inf/-inf hazards

        m_prev = m_scr[...]
        m_new = jnp.maximum(m_prev, jnp.max(s, axis=-1, keepdims=True))
        alpha = jnp.exp(m_prev - m_new)
        p = jnp.exp(s - m_new)                                  # fp32 softmax math
        l_scr[...] = alpha * l_scr[...] + jnp.sum(p, axis=-1, keepdims=True)
        acc_scr[...] = alpha * acc_scr[...] + jnp.dot(
            p.astype(jnp.bfloat16), v_ref[...].astype(jnp.bfloat16),
            preferred_element_type=jnp.float32)
        m_scr[...] = m_new

    @pl.when(ki == pl.num_programs(2) - 1)
    def _finalize():
        inv_l = pl.reciprocal(l_scr[...], approx=True)          # EUP slot, ~free
        o_ref[...] = (acc_scr[...] * inv_l).astype(o_ref.dtype)


def _flash_attention(q, k, v, *, scale, tq_pref=128, tkv_pref=128):
    BH, T, hd = q.shape
    tq = _pick_tile(T, tq_pref, 8)
    tkv = _pick_tile(T, tkv_pref, 8)
    kernel = functools.partial(_flash_kernel, scale=scale, tq=tq, tkv=tkv)
    return pl.pallas_call(
        kernel,
        out_shape=jax.ShapeDtypeStruct((BH, T, hd), jnp.float32),
        grid_spec=pltpu.PrefetchScalarGridSpec(
            num_scalar_prefetch=0,
            grid=(BH, T // tq, T // tkv),
            in_specs=[
                pl.BlockSpec((None, tq, hd), lambda b, qi, ki: (b, qi, 0)),   # Q tile
                pl.BlockSpec((None, tkv, hd), lambda b, qi, ki: (b, ki, 0)),  # K tile
                pl.BlockSpec((None, tkv, hd), lambda b, qi, ki: (b, ki, 0)),  # V tile
            ],
            out_specs=pl.BlockSpec((None, tq, hd), lambda b, qi, ki: (b, qi, 0)),
            scratch_shapes=[
                pltpu.VMEM((tq, 1), jnp.float32),    # running max  m
                pltpu.VMEM((tq, 1), jnp.float32),    # running sum  l
                pltpu.VMEM((tq, hd), jnp.float32),   # fp32 output accumulator
            ],
        ),
        compiler_params=pltpu.CompilerParams(
            dimension_semantics=("parallel", "parallel", "arbitrary")),
    )(q, k, v)


# ----------------------------------------------------------------------------
# Full module forward
# ----------------------------------------------------------------------------
def causal_self_attention(x, w_attn, b_attn, w_proj, b_proj, *, n_head):
    """x: (B, T, C); w_attn: (C, 3C); b_attn: (3C,); w_proj: (C, C); b_proj: (C,)."""
    B, T, C = x.shape
    assert C % n_head == 0
    hd = C // n_head
    # NOTE: the PyTorch reference scales by 1/sqrt(n_embd), NOT 1/sqrt(head_dim)
    scale = 1.0 / math.sqrt(C)

    # QKV projection (Pallas tiled linear): (B*T, 3C)
    qkv = _linear(x.reshape(B * T, C), w_attn, b_attn)

    # Split + head-major layout (layout-only XLA ops between kernels):
    # (B, T, 3, n_head, hd) -> (3, B*n_head, T, hd)
    qkv = qkv.reshape(B, T, 3, n_head, hd)
    qkv = jnp.transpose(qkv, (2, 0, 3, 1, 4)).reshape(3, B * n_head, T, hd)
    q, k, v = qkv[0], qkv[1], qkv[2]

    # Flash-style causal attention (Pallas): (B*n_head, T, hd)
    y = _flash_attention(q, k, v, scale=scale)

    # Merge heads back to (B*T, C) and apply output projection (Pallas linear).
    # TODO(synk): for very small head_dim, pack multiple heads per MXU call to
    # better fill the 128/256-wide systolic array.
    y = y.reshape(B, n_head, T, hd).transpose(0, 2, 1, 3).reshape(B * T, C)
    out = _linear(y, w_proj, b_proj)
    return out.reshape(B, T, C)


# ----------------------------------------------------------------------------
# Pure-JAX fp32 reference mirroring the PyTorch module
# ----------------------------------------------------------------------------
def _reference(x, w_attn, b_attn, w_proj, b_proj, n_head):
    B, T, C = x.shape
    hd = C // n_head
    qkv = x @ w_attn + b_attn
    q, k, v = jnp.split(qkv, 3, axis=2)
    q = q.reshape(B, T, n_head, hd).transpose(0, 2, 1, 3)
    k = k.reshape(B, T, n_head, hd).transpose(0, 2, 1, 3)
    v = v.reshape(B, T, n_head, hd).transpose(0, 2, 1, 3)
    att = jnp.einsum("bhqd,bhkd->bhqk", q, k) * (1.0 / math.sqrt(C))
    mask = jnp.tril(jnp.ones((T, T), dtype=bool))
    att = jnp.where(mask[None, None], att, -jnp.inf)
    att = jax.nn.softmax(att, axis=-1)
    y = jnp.einsum("bhqk,bhkd->bhqd", att, v)
    y = y.transpose(0, 2, 1, 3).reshape(B, T, C)
    return y @ w_proj + b_proj


if __name__ == "__main__":
    # config: n_embd=32, n_head=4, block_size=8 ; input B=2, T=8, C=32
    B, T, C, n_head = 2, 8, 32, 4

    key = jax.random.PRNGKey(0)
    kx, k1, k2, k3, k4 = jax.random.split(key, 5)

    x = jax.random.normal(kx, (B, T, C), dtype=jnp.float32)
    # deterministic "Linear"-style init (in_features, out_features layout)
    w_attn = jax.random.normal(k1, (C, 3 * C), dtype=jnp.float32) * (1.0 / math.sqrt(C))
    b_attn = jax.random.normal(k2, (3 * C,), dtype=jnp.float32) * 0.02
    w_proj = jax.random.normal(k3, (C, C), dtype=jnp.float32) * (1.0 / math.sqrt(C))
    b_proj = jax.random.normal(k4, (C,), dtype=jnp.float32) * 0.02

    out = causal_self_attention(x, w_attn, b_attn, w_proj, b_proj, n_head=n_head)
    out = jax.block_until_ready(out)

    ref = _reference(x, w_attn, b_attn, w_proj, b_proj, n_head)
    assert out.shape == (B, T, C)
    # bf16 MXU operands with fp32 accumulation -> compare at bf16-level tolerance
    max_diff = float(jnp.max(jnp.abs(out - ref)))
    assert jnp.allclose(out, ref, atol=5e-2, rtol=5e-2), (
        f"mismatch vs reference, max abs diff = {max_diff}")

    print("KERNEL_OK")
</pallas_src>

<mosaic_0001>
module attributes {stable_mosaic.version = 11 : i64} {
  func.func @_linear_kernel(%arg0: i32, %arg1: i32, %arg2: memref<16x32xf32, #tpu.memory_space<vmem>>, %arg3: memref<32x96xf32, #tpu.memory_space<vmem>>, %arg4: memref<1x96xf32, #tpu.memory_space<vmem>>, %arg5: memref<16x96xf32, #tpu.memory_space<vmem>>) attributes {dimension_semantics = [#tpu.dimension_semantics<parallel>, #tpu.dimension_semantics<parallel>], iteration_bounds = array<i64: 1, 1>, scalar_prefetch = 0 : i64, scratch_operands = 0 : i64, tpu.core_type = #tpu.core_type<tc>, window_params = [{transform_indices = @transform_0, window_bounds = array<i64: 16, 32>}, {transform_indices = @transform_1, window_bounds = array<i64: 32, 96>}, {transform_indices = @transform_2, window_bounds = array<i64: 1, 96>}, {transform_indices = @transform_3, window_bounds = array<i64: 16, 96>}]} {
    %c0 = arith.constant 0 : index
    %c0_0 = arith.constant 0 : index
    %0 = vector.load %arg2[%c0, %c0_0] : memref<16x32xf32, #tpu.memory_space<vmem>>, vector<16x32xf32>
    %1 = arith.truncf %0 : vector<16x32xf32> to vector<16x32xbf16>
    %c0_1 = arith.constant 0 : index
    %c0_2 = arith.constant 0 : index
    %2 = vector.load %arg3[%c0_1, %c0_2] : memref<32x96xf32, #tpu.memory_space<vmem>>, vector<32x96xf32>
    %3 = arith.truncf %2 : vector<32x96xf32> to vector<32x96xbf16>
    %cst = arith.constant dense<0.000000e+00> : vector<16x96xf32>
    %4 = tpu.matmul %1, %3, %cst {dimension_numbers = #tpu.dot_dimension_numbers<[1], [0], [0], [1], [0, 0, 1, 1], [], []>} : vector<16x32xbf16>, vector<32x96xbf16>, vector<16x96xf32> -> vector<16x96xf32>
    %c0_3 = arith.constant 0 : index
    %c0_4 = arith.constant 0 : index
    %5 = vector.load %arg4[%c0_3, %c0_4] : memref<1x96xf32, #tpu.memory_space<vmem>>, vector<1x96xf32>
    %6 = vector.broadcast %5 : vector<1x96xf32> to vector<16x96xf32>
    %7 = arith.addf %4, %6 : vector<16x96xf32>
    %c0_5 = arith.constant 0 : index
    %c0_6 = arith.constant 0 : index
    %8 = vector.load %arg5[%c0_5, %c0_6] : memref<16x96xf32, #tpu.memory_space<vmem>>, vector<16x96xf32>
    tpu.vector_store %arg5[%c0_5, %c0_6], %7 {strides = array<i32>} : memref<16x96xf32, #tpu.memory_space<vmem>>, vector<16x96xf32>,
    return
  }
  func.func @transform_0(%arg0: i32, %arg1: i32) -> (i32, i32) {
    %c0_i32 = arith.constant 0 : i32
    %c0_i32_0 = arith.constant 0 : i32
    return %arg0, %c0_i32 : i32, i32
  }
  func.func @transform_1(%arg0: i32, %arg1: i32) -> (i32, i32) {
    %c0_i32 = arith.constant 0 : i32
    %c0_i32_0 = arith.constant 0 : i32
    return %c0_i32, %arg1 : i32, i32
  }
  func.func @transform_2(%arg0: i32, %arg1: i32) -> (i32, i32) {
    %c0_i32 = arith.constant 0 : i32
    %c0_i32_0 = arith.constant 0 : i32
    return %c0_i32, %arg1 : i32, i32
  }
  func.func @transform_3(%arg0: i32, %arg1: i32) -> (i32, i32) {
    %c0_i32 = arith.constant 0 : i32
    return %arg0, %arg1 : i32, i32
  }
}

</mosaic_0001>

<llo_original>
// kernel: tpu_custom_call.1
$region0: #{tpu_custom_call.1}
  #allocation0 [shape = 'u32[]', space=smem, size = 0x4, offset = 0x4, fixed_abs, tag = 'smem constant byte address 0x4 - core index']
  #allocation1 [shape = 'u32[144,128]{1,0:T(1,128)}', space=vmem, size = 0x12000, scoped, tag = 'internal scratch']
  %s0 = inlined_call_operand.hbm [shape: f32[16,32], index: 0, kind: input, shape index: {}]
  %s1 = inlined_call_operand.hbm [shape: f32[32,96], index: 1, kind: input, shape index: {}]
  %s2 = inlined_call_operand.vmem [shape: f32[1,96], index: 2, kind: input, shape index: {}]
  %s3 = inlined_call_operand.hbm [shape: f32[16,96], index: 3, kind: output, shape index: {}]
  %s4 = sld [smem:[#allocation0]]
  $region30: #{tpu_custom_call.1} parent=0
    _
  %s6 = ssub.s32 1, %s4
  %s7 = scalar_select 0, %s6, %s4
  $region1: #{tpu_custom_call.1} parent=0
    #allocation2 [shape = 'u8[8192]{0}', space=vmem, size = 0x2000, scoped, tag = 'input window, operand 0, single buffered']
    #allocation3 [shape = 's32[1]{0}', space=sflag, size = 0x4, scoped, tag = 'scoped memory for tpu_custom_call.1']
    #allocation4 [shape = 's32[1]{0}', space=sflag, size = 0x4, scoped, tag = 'scoped memory for tpu_custom_call.1']
    #allocation5 [shape = 'u8[16384]{0}', space=vmem, size = 0x4000, scoped, tag = 'input window, operand 1, single buffered']
    #allocation6 [shape = 's32[1]{0}', space=sflag, size = 0x4, scoped, tag = 'scoped memory for tpu_custom_call.1']
    #allocation7 [shape = 'u8[8192]{0}', space=vmem, size = 0x2000, scoped, tag = 'output window, operand 0, single buffered']
    %8 = vsyncpa [#allocation3], 0
    %9 = vsyncpa [#allocation6], 0
    %10 = vsyncpa [#allocation4], 0
    // Predicated region
    $region2: #{tpu_custom_call.1} parent=1 // pred_check
      _
    $region3: #{tpu_custom_call.1} parent=1 // pred_check_branch
      %12 = sbr.rel (0) target = $region5
    $region4: #{tpu_custom_call.1} parent=1 // pred_region
      %s14 = ssub.s32 256, 256
      %15 = vsyncadd [#allocation3], %s14
      %s16 = sshll.u32 [#allocation2], 4
      %s17 = int_to_ptr.vmem [resolvable:$true] %s16
      %22 = dma.hbm_to_vmem [thread:$0]  %s0, 256, %s17, [#allocation3], 128, 128, 8
    $region5: #{tpu_custom_call.1} parent=1 // pred_fallthru
      _
    // Predicated region
    $region6: #{tpu_custom_call.1} parent=1 // pred_check
      _
    $region7: #{tpu_custom_call.1} parent=1 // pred_check_branch
      %24 = sbr.rel (0) target = $region9
    $region8: #{tpu_custom_call.1} parent=1 // pred_region
      %s26 = ssub.s32 512, 512
      %27 = vsyncadd [#allocation6], %s26
      %s28 = sshll.u32 [#allocation5], 4
      %s29 = int_to_ptr.vmem [resolvable:$true] %s28
      %34 = dma.hbm_to_vmem [thread:$0]  %s1, 512, %s29, [#allocation6], 128, 128, 8
    $region9: #{tpu_custom_call.1} parent=1 // pred_fallthru
      _
    // Predicated region
    $region10: #{tpu_custom_call.1} parent=1 // pred_check
      _
    $region11: #{tpu_custom_call.1} parent=1 // pred_check_branch
      %36 = sbr.rel (0) target = $region13
    $region12: #{tpu_custom_call.1} parent=1 // pred_region
      _
    $region13: #{tpu_custom_call.1} parent=1 // pred_fallthru
      _
    // Predicated region
    $region14: #{tpu_custom_call.1} parent=1 // pred_check
      _
    $region15: #{tpu_custom_call.1} parent=1 // pred_check_branch
      %38 = sbr.rel (0) target = $region17
    $region16: #{tpu_custom_call.1} parent=1 // pred_region
      %39 = dma.done [#allocation3], 256
    $region17: #{tpu_custom_call.1} parent=1 // pred_fallthru
      _
    // Predicated region
    $region18: #{tpu_custom_call.1} parent=1 // pred_check
      _
    $region19: #{tpu_custom_call.1} parent=1 // pred_check_branch
      %41 = sbr.rel (0) target = $region21
    $region20: #{tpu_custom_call.1} parent=1 // pred_region
      %42 = dma.done [#allocation6], 512
    $region21: #{tpu_custom_call.1} parent=1 // pred_fallthru
      _
    %v44 = vld [vmem:[#allocation2] sm:$0xff]
    %v45 = vld [vmem:[#allocation2 + $0x8] sm:$0xff]
    %v46 = vpack.c.bf16 %v45, %v44
    %v47 = vld [vmem:[#allocation5] sm:$0xff]
    %v48 = vld [vmem:[#allocation5 + $0x8] sm:$0xff]
    %v49 = vld [vmem:[#allocation5 + $0x10] sm:$0xff]
    %v50 = vld [vmem:[#allocation5 + $0x18] sm:$0xff]
    %v51 = vpack.c.bf16 %v48, %v47
    %v52 = vpack.c.bf16 %v50, %v49
    %v53 = vld [vmem:[%s2] sm:$0x1]
    %v55 = vlaneseq
    %v56 = vshrl.u32 %v55, 7
    %v57 = vsub.s32 0, %v56
    %v58 = vrot.slane %v53, %v57
    %vm60 = vcmask 261120
    %v62 = vsel %vm60, %v46, 0
    %64 = vmatprep.subr.bf16.mxu0 0
    %65 = vmatpush1.bf16.msra.mxu0 %v51
    %66 = vmatprep.subr.bf16.mxu0 0
    %67 = vmatpush1.bf16.msra.mxu0 %v52
    %68 = vmatprep.subr.bf16.mxu0 0
    %69 = vmatpush1.bf16.msra.mxu0 0
    %70 = vmatprep.subr.bf16.mxu0 0
    %71 = vmatpush1.bf16.msra.mxu0 0
    %72 = vmatprep.subr.bf16.mxu0 0
    %73 = vmatpush1.bf16.msra.mxu0 0
    %74 = vmatprep.subr.bf16.mxu0 0
    %75 = vmatpush1.bf16.msra.mxu0 0
    %76 = vmatprep.subr.bf16.mxu0 0
    %77 = vmatpush1.bf16.msra.mxu0 0
    %78 = vmatprep.subr.bf16.mxu0 0
    %79 = vmatpush1.bf16.msra.mxu0 0
    %80 = vmatprep.subr.bf16.mxu0 0
    %81 = vmatpush1.bf16.msra.mxu0 0
    %82 = vmatprep.subr.bf16.mxu0 0
    %83 = vmatpush1.bf16.msra.mxu0 0
    %84 = vmatprep.subr.bf16.mxu0 0
    %85 = vmatpush1.bf16.msra.mxu0 0
    %86 = vmatprep.subr.bf16.mxu0 0
    %87 = vmatpush1.bf16.msra.mxu0 0
    %88 = vmatprep.subr.bf16.mxu0 0
    %89 = vmatpush1.bf16.msra.mxu0 0
    %90 = vmatprep.subr.bf16.mxu0 0
    %91 = vmatpush1.bf16.msra.mxu0 0
    %92 = vmatprep.subr.bf16.mxu0 0
    %93 = vmatpush1.bf16.msra.mxu0 0
    %94 = vmatprep.subr.bf16.mxu0 0
    %95 = vmatpush1.bf16.msra.mxu0 0
    %96 = vmatprep.mubr.bf16.mxu0 0
    %97 = vmatmul.mubr.bf16.gmra.mrb[0].mxu0 %v62
    %v98 = vpop.f32.mrb[0].mxu0
    %v99 = vadd.f32 %v58, %v98
    %v100 = vpop.f32.mrb[0].mxu0
    %v101 = vpop.f32.mrb[0].mxu0
    %v102 = vadd.f32 %v58, %v101
    %v103 = vpop.f32.mrb[0].mxu0
    %104 = vdwg.mxu0
    %vm105 = vcmask 785408
    %106 = vst.msk [vmem:[#allocation7] sm:$0xff] %vm105, %v99
    %107 = vst.msk [vmem:[#allocation7 + $0x8] sm:$0xff] %vm105, %v102
    // Predicated region
    $region22: #{tpu_custom_call.1} parent=1 // pred_check
      _
    $region23: #{tpu_custom_call.1} parent=1 // pred_check_branch
      %109 = sbr.rel (0) target = $region25
    $region24: #{tpu_custom_call.1} parent=1 // pred_region
      %s111 = ssub.s32 256, 256
      %112 = vsyncadd [#allocation4], %s111
      %s113 = sshll.u32 [#allocation7], 4
      %s114 = int_to_ptr.vmem [resolvable:$true] %s113
      %119 = dma.vmem_to_hbm [thread:$0]  %s114, 256, %s3, [#allocation4], 128, 128, 8
    $region25: #{tpu_custom_call.1} parent=1 // pred_fallthru
      _
    // Predicated region
    $region26: #{tpu_custom_call.1} parent=1 // pred_check
      _
    $region27: #{tpu_custom_call.1} parent=1 // pred_check_branch
      %121 = sbr.rel (0) target = $region29
    $region28: #{tpu_custom_call.1} parent=1 // pred_region
      %122 = dma.done [#allocation4], 256
    $region29: #{tpu_custom_call.1} parent=1 // pred_fallthru
      _
    %123 = vsyncpa [#allocation3], 1
    %124 = vsyncpa [#allocation6], 1
    %125 = vsyncpa [#allocation4], 1

</llo_original>
